<compile_context>
chip_gen: v7x
topology: tpu7x:2x2x1
jax: 0.10.0
libtpu: 0.0.40
codegen_flags: <defaults>
</compile_context>

<pallas_src>
import jax
import jax.numpy as jnp
from jax.experimental import pallas as pl
from jax.experimental.pallas import tpu as pltpu

DROP_P = 0.2
# keep iff bits < (1-p) * 2^32  (uint32 threshold; avoids uint->float conversion)
_KEEP_THRESHOLD = int((1.0 - DROP_P) * (1 << 32))


def mlp_kernel(x_ref, bits1_ref, bits2_ref,
               w1_ref, b1_ref, w2_ref, b2_ref, w3_ref, b3_ref, o_ref):
    thresh = jnp.uint32(_KEEP_THRESHOLD)
    x = x_ref[...]

    # dense1 + relu + dropout (1/(1-p) scale is folded into w2)
    h = jnp.dot(x, w1_ref[...], preferred_element_type=jnp.float32) + b1_ref[...]
    h = jnp.maximum(h, 0.0)
    h = jnp.where(bits1_ref[...] < thresh, h, 0.0)

    # dense2 + relu + dropout (1/(1-p) scale is folded into w3)
    h = jnp.dot(h, w2_ref[...], preferred_element_type=jnp.float32) + b2_ref[...]
    h = jnp.maximum(h, 0.0)
    h = jnp.where(bits2_ref[...] < thresh, h, 0.0)

    # dense3 + softmax over the class axis (dim=1)
    logits = jnp.dot(h, w3_ref[...], preferred_element_type=jnp.float32) + b3_ref[...]
    m = jnp.max(logits, axis=1, keepdims=True)
    e = jnp.exp(logits - m)
    # NOTE: on real TPU hardware pl.reciprocal(..., approx=True) would push this
    # divide to the otherwise-idle EUP; exact division is kept for portability
    # (interpret mode) and to keep row sums == 1 to tight tolerance.
    o_ref[...] = e / jnp.sum(e, axis=1, keepdims=True)


def _round_up(n, m):
    return ((n + m - 1) // m) * m


def net_forward(x, params, key, *, tile_b=512, training=True):
    """x: [B, 4] float32. params: dict of (W[in,out], b[1,out]). Returns [B, 3]."""
    B, F = x.shape
    tile_b = min(tile_b, _round_up(B, 8))      # sublane-aligned batch tile
    pad_B = _round_up(B, tile_b)
    if pad_B != B:
        x = jnp.pad(x, ((0, pad_B - B), (0, 0)))

    w1, b1 = params["w1"], params["b1"]
    scale = (1.0 / (1.0 - DROP_P)) if training else 1.0
    w2 = params["w2"] * scale                  # fold inverted-dropout scale
    b2 = params["b2"]
    w3 = params["w3"] * scale
    b3 = params["b3"]
    H1, H2, C = w1.shape[1], w2.shape[1], w3.shape[1]

    if training:
        k1, k2 = jax.random.split(key)
        bits1 = jax.random.bits(k1, (pad_B, H1), jnp.uint32)
        bits2 = jax.random.bits(k2, (pad_B, H2), jnp.uint32)
    else:
        bits1 = jnp.zeros((pad_B, H1), jnp.uint32)   # always below threshold -> keep all
        bits2 = jnp.zeros((pad_B, H2), jnp.uint32)

    grid = (pad_B // tile_b,)

    def row_spec(width):
        return pl.BlockSpec((tile_b, width), lambda i: (i, 0))

    def resident(shape):                        # whole array, same block every tile
        return pl.BlockSpec(shape, lambda i: (0, 0))

    out = pl.pallas_call(
        mlp_kernel,
        out_shape=jax.ShapeDtypeStruct((pad_B, C), jnp.float32),
        grid=grid,
        in_specs=[row_spec(F), row_spec(H1), row_spec(H2),
                  resident(w1.shape), resident(b1.shape),
                  resident(w2.shape), resident(b2.shape),
                  resident(w3.shape), resident(b3.shape)],
        out_specs=row_spec(C),
        compiler_params=pltpu.CompilerParams(
            dimension_semantics=("parallel",)),
    )(x, bits1, bits2, w1, b1, w2, b2, w3, b3)

    return out[:B]


def init_params(key):
    """nn.Linear-style init; shapes dense1(4,50), dense2(50,50), dense3(50,3).

    Weights are stored as [in, out] (transpose of torch's [out, in])."""
    def linear(key, fan_in, fan_out):
        kw, kb = jax.random.split(key)
        bound = 1.0 / jnp.sqrt(fan_in)
        w = jax.random.uniform(kw, (fan_in, fan_out), jnp.float32, -bound, bound)
        b = jax.random.uniform(kb, (1, fan_out), jnp.float32, -bound, bound)
        return w, b

    k1, k2, k3 = jax.random.split(key, 3)
    w1, b1 = linear(k1, 4, 50)
    w2, b2 = linear(k2, 50, 50)
    w3, b3 = linear(k3, 50, 3)
    return {"w1": w1, "b1": b1, "w2": w2, "b2": b2, "w3": w3, "b3": b3}


if __name__ == "__main__":
    key = jax.random.PRNGKey(0)
    kp, kx, kd = jax.random.split(key, 3)

    params = init_params(kp)
    # Small iris-like batch: 8 samples, 4 features.
    x = jax.random.uniform(kx, (8, 4), jnp.float32, 0.0, 8.0)

    out = net_forward(x, params, kd, training=True)
    out = jax.block_until_ready(out)

    assert out.shape == (8, 3)
    # softmax rows must sum to ~1
    assert jnp.allclose(jnp.sum(out, axis=1), 1.0, atol=1e-4)
    print("KERNEL_OK")
</pallas_src>

<mosaic_0001>
module attributes {stable_mosaic.version = 11 : i64} {
  func.func @mlp_kernel(%arg0: i32, %arg1: memref<8x4xf32, #tpu.memory_space<vmem>>, %arg2: memref<8x50xi32, #tpu.memory_space<vmem>>, %arg3: memref<8x50xi32, #tpu.memory_space<vmem>>, %arg4: memref<4x50xf32, #tpu.memory_space<vmem>>, %arg5: memref<1x50xf32, #tpu.memory_space<vmem>>, %arg6: memref<50x50xf32, #tpu.memory_space<vmem>>, %arg7: memref<1x50xf32, #tpu.memory_space<vmem>>, %arg8: memref<50x3xf32, #tpu.memory_space<vmem>>, %arg9: memref<1x3xf32, #tpu.memory_space<vmem>>, %arg10: memref<8x3xf32, #tpu.memory_space<vmem>>) attributes {dimension_semantics = [#tpu.dimension_semantics<parallel>], iteration_bounds = array<i64: 1>, scalar_prefetch = 0 : i64, scratch_operands = 0 : i64, tpu.core_type = #tpu.core_type<tc>, window_params = [{transform_indices = @transform_0, window_bounds = array<i64: 8, 4>}, {transform_indices = @transform_1, window_bounds = array<i64: 8, 50>}, {transform_indices = @transform_2, window_bounds = array<i64: 8, 50>}, {pipeline_mode = #tpu.pipeline_mode<synchronous>, transform_indices = @transform_3, window_bounds = array<i64: 4, 50>}, {pipeline_mode = #tpu.pipeline_mode<synchronous>, transform_indices = @transform_4, window_bounds = array<i64: 1, 50>}, {pipeline_mode = #tpu.pipeline_mode<synchronous>, transform_indices = @transform_5, window_bounds = array<i64: 50, 50>}, {pipeline_mode = #tpu.pipeline_mode<synchronous>, transform_indices = @transform_6, window_bounds = array<i64: 1, 50>}, {pipeline_mode = #tpu.pipeline_mode<synchronous>, transform_indices = @transform_7, window_bounds = array<i64: 50, 3>}, {pipeline_mode = #tpu.pipeline_mode<synchronous>, transform_indices = @transform_8, window_bounds = array<i64: 1, 3>}, {transform_indices = @transform_9, window_bounds = array<i64: 8, 3>}]} {
    %c0 = arith.constant 0 : index
    %c0_0 = arith.constant 0 : index
    %0 = vector.load %arg1[%c0, %c0_0] : memref<8x4xf32, #tpu.memory_space<vmem>>, vector<8x4xf32>
    %c0_1 = arith.constant 0 : index
    %c0_2 = arith.constant 0 : index
    %1 = vector.load %arg4[%c0_1, %c0_2] : memref<4x50xf32, #tpu.memory_space<vmem>>, vector<4x50xf32>
    %cst = arith.constant dense<0.000000e+00> : vector<8x50xf32>
    %2 = tpu.matmul %0, %1, %cst {dimension_numbers = #tpu.dot_dimension_numbers<[1], [0], [0], [1], [0, 0, 1, 1], [], []>} : vector<8x4xf32>, vector<4x50xf32>, vector<8x50xf32> -> vector<8x50xf32>
    %c0_3 = arith.constant 0 : index
    %c0_4 = arith.constant 0 : index
    %3 = vector.load %arg5[%c0_3, %c0_4] : memref<1x50xf32, #tpu.memory_space<vmem>>, vector<1x50xf32>
    %4 = vector.broadcast %3 : vector<1x50xf32> to vector<8x50xf32>
    %5 = arith.addf %2, %4 : vector<8x50xf32>
    %cst_5 = arith.constant 0.000000e+00 : f32
    %6 = vector.broadcast %cst_5 : f32 to vector<8x50xf32>
    %7 = arith.maximumf %5, %6 : vector<8x50xf32>
    %c0_6 = arith.constant 0 : index
    %c0_7 = arith.constant 0 : index
    %8 = vector.load %arg2[%c0_6, %c0_7] : memref<8x50xi32, #tpu.memory_space<vmem>>, vector<8x50xi32>
    %c-858993460_i32 = arith.constant -858993460 : i32
    %9 = vector.broadcast %c-858993460_i32 : i32 to vector<8x50xi32>
    %10 = arith.cmpi ult, %8, %9 : vector<8x50xi32>
    %cst_8 = arith.constant 0.000000e+00 : f32
    %11 = vector.broadcast %cst_8 : f32 to vector<8x50xf32>
    %12 = arith.select %10, %7, %11 : vector<8x50xi1>, vector<8x50xf32>
    %c0_9 = arith.constant 0 : index
    %c0_10 = arith.constant 0 : index
    %13 = vector.load %arg6[%c0_9, %c0_10] : memref<50x50xf32, #tpu.memory_space<vmem>>, vector<50x50xf32>
    %cst_11 = arith.constant dense<0.000000e+00> : vector<8x50xf32>
    %14 = tpu.matmul %12, %13, %cst_11 {dimension_numbers = #tpu.dot_dimension_numbers<[1], [0], [0], [1], [0, 0, 1, 1], [], []>} : vector<8x50xf32>, vector<50x50xf32>, vector<8x50xf32> -> vector<8x50xf32>
    %c0_12 = arith.constant 0 : index
    %c0_13 = arith.constant 0 : index
    %15 = vector.load %arg7[%c0_12, %c0_13] : memref<1x50xf32, #tpu.memory_space<vmem>>, vector<1x50xf32>
    %16 = vector.broadcast %15 : vector<1x50xf32> to vector<8x50xf32>
    %17 = arith.addf %14, %16 : vector<8x50xf32>
    %cst_14 = arith.constant 0.000000e+00 : f32
    %18 = vector.broadcast %cst_14 : f32 to vector<8x50xf32>
    %19 = arith.maximumf %17, %18 : vector<8x50xf32>
    %c0_15 = arith.constant 0 : index
    %c0_16 = arith.constant 0 : index
    %20 = vector.load %arg3[%c0_15, %c0_16] : memref<8x50xi32, #tpu.memory_space<vmem>>, vector<8x50xi32>
    %c-858993460_i32_17 = arith.constant -858993460 : i32
    %21 = vector.broadcast %c-858993460_i32_17 : i32 to vector<8x50xi32>
    %22 = arith.cmpi ult, %20, %21 : vector<8x50xi32>
    %cst_18 = arith.constant 0.000000e+00 : f32
    %23 = vector.broadcast %cst_18 : f32 to vector<8x50xf32>
    %24 = arith.select %22, %19, %23 : vector<8x50xi1>, vector<8x50xf32>
    %c0_19 = arith.constant 0 : index
    %c0_20 = arith.constant 0 : index
    %25 = vector.load %arg8[%c0_19, %c0_20] : memref<50x3xf32, #tpu.memory_space<vmem>>, vector<50x3xf32>
    %cst_21 = arith.constant dense<0.000000e+00> : vector<8x3xf32>
    %26 = tpu.matmul %24, %25, %cst_21 {dimension_numbers = #tpu.dot_dimension_numbers<[1], [0], [0], [1], [0, 0, 1, 1], [], []>} : vector<8x50xf32>, vector<50x3xf32>, vector<8x3xf32> -> vector<8x3xf32>
    %c0_22 = arith.constant 0 : index
    %c0_23 = arith.constant 0 : index
    %27 = vector.load %arg9[%c0_22, %c0_23] : memref<1x3xf32, #tpu.memory_space<vmem>>, vector<1x3xf32>
    %28 = vector.broadcast %27 : vector<1x3xf32> to vector<8x3xf32>
    %29 = arith.addf %26, %28 : vector<8x3xf32>
    %cst_24 = arith.constant dense<0xFF800000> : vector<8xf32>
    %30 = vector.multi_reduction <maximumf>, %29, %cst_24 [1] : vector<8x3xf32> to vector<8xf32>
    %31 = vector.shape_cast %30 : vector<8xf32> to vector<8x1xf32>
    %32 = vector.broadcast %31 : vector<8x1xf32> to vector<8x3xf32>
    %33 = arith.subf %29, %32 : vector<8x3xf32>
    %34 = math.exp %33 : vector<8x3xf32>
    %cst_25 = arith.constant dense<0.000000e+00> : vector<8xf32>
    %35 = vector.multi_reduction <add>, %34, %cst_25 [1] : vector<8x3xf32> to vector<8xf32>
    %36 = vector.shape_cast %35 : vector<8xf32> to vector<8x1xf32>
    %37 = vector.broadcast %36 : vector<8x1xf32> to vector<8x3xf32>
    %38 = arith.divf %34, %37 : vector<8x3xf32>
    %c0_26 = arith.constant 0 : index
    %c0_27 = arith.constant 0 : index
    %39 = vector.load %arg10[%c0_26, %c0_27] : memref<8x3xf32, #tpu.memory_space<vmem>>, vector<8x3xf32>
    tpu.vector_store %arg10[%c0_26, %c0_27], %38 {strides = array<i32>} : memref<8x3xf32, #tpu.memory_space<vmem>>, vector<8x3xf32>,
    return
  }
  func.func @transform_0(%arg0: i32) -> (i32, i32) {
    %c0_i32 = arith.constant 0 : i32
    %c0_i32_0 = arith.constant 0 : i32
    return %arg0, %c0_i32 : i32, i32
  }
  func.func @transform_1(%arg0: i32) -> (i32, i32) {
    %c0_i32 = arith.constant 0 : i32
    %c0_i32_0 = arith.constant 0 : i32
    return %arg0, %c0_i32 : i32, i32
  }
  func.func @transform_2(%arg0: i32) -> (i32, i32) {
    %c0_i32 = arith.constant 0 : i32
    %c0_i32_0 = arith.constant 0 : i32
    return %arg0, %c0_i32 : i32, i32
  }
  func.func @transform_3(%arg0: i32) -> (i32, i32) {
    %c0_i32 = arith.constant 0 : i32
    %c0_i32_0 = arith.constant 0 : i32
    %c0_i32_1 = arith.constant 0 : i32
    return %c0_i32, %c0_i32_0 : i32, i32
  }
  func.func @transform_4(%arg0: i32) -> (i32, i32) {
    %c0_i32 = arith.constant 0 : i32
    %c0_i32_0 = arith.constant 0 : i32
    %c0_i32_1 = arith.constant 0 : i32
    return %c0_i32, %c0_i32_0 : i32, i32
  }
  func.func @transform_5(%arg0: i32) -> (i32, i32) {
    %c0_i32 = arith.constant 0 : i32
    %c0_i32_0 = arith.constant 0 : i32
    %c0_i32_1 = arith.constant 0 : i32
    return %c0_i32, %c0_i32_0 : i32, i32
  }
  func.func @transform_6(%arg0: i32) -> (i32, i32) {
    %c0_i32 = arith.constant 0 : i32
    %c0_i32_0 = arith.constant 0 : i32
    %c0_i32_1 = arith.constant 0 : i32
    return %c0_i32, %c0_i32_0 : i32, i32
  }
  func.func @transform_7(%arg0: i32) -> (i32, i32) {
    %c0_i32 = arith.constant 0 : i32
    %c0_i32_0 = arith.constant 0 : i32
    %c0_i32_1 = arith.constant 0 : i32
    return %c0_i32, %c0_i32_0 : i32, i32
  }
  func.func @transform_8(%arg0: i32) -> (i32, i32) {
    %c0_i32 = arith.constant 0 : i32
    %c0_i32_0 = arith.constant 0 : i32
    %c0_i32_1 = arith.constant 0 : i32
    return %c0_i32, %c0_i32_0 : i32, i32
  }
  func.func @transform_9(%arg0: i32) -> (i32, i32) {
    %c0_i32 = arith.constant 0 : i32
    %c0_i32_0 = arith.constant 0 : i32
    return %arg0, %c0_i32 : i32, i32
  }
}

</mosaic_0001>

<llo_original>
// kernel: tpu_custom_call.1
$region0: #{tpu_custom_call.1}
  #allocation0 [shape = 'u32[]', space=smem, size = 0x4, offset = 0x4, fixed_abs, tag = 'smem constant byte address 0x4 - core index']
  #allocation1 [shape = 'u32[144,128]{1,0:T(1,128)}', space=vmem, size = 0x12000, scoped, tag = 'internal scratch']
  %s0 = inlined_call_operand.vmem [shape: f32[8,4], index: 0, kind: input, shape index: {}]
  %s1 = inlined_call_operand.vmem [shape: u32[8,50], index: 1, kind: input, shape index: {}]
  %s2 = inlined_call_operand.vmem [shape: u32[8,50], index: 2, kind: input, shape index: {}]
  %s3 = inlined_call_operand.vmem [shape: f32[4,50], index: 3, kind: input, shape index: {}]
  %s4 = inlined_call_operand.vmem [shape: f32[1,50], index: 4, kind: input, shape index: {}]
  %s5 = inlined_call_operand.vmem [shape: f32[50,50], index: 5, kind: input, shape index: {}]
  %s6 = inlined_call_operand.vmem [shape: f32[1,50], index: 6, kind: input, shape index: {}]
  %s7 = inlined_call_operand.vmem [shape: f32[50,3], index: 7, kind: input, shape index: {}]
  %s8 = inlined_call_operand.vmem [shape: f32[1,3], index: 8, kind: input, shape index: {}]
  %s9 = inlined_call_operand.vmem [shape: f32[8,3], index: 9, kind: output, shape index: {}]
  %s10 = sld [smem:[#allocation0]]
  $region46: #{tpu_custom_call.1} parent=0
    _
  %s12 = ssub.s32 1, %s10
  %s13 = scalar_select 0, %s12, %s10
  // Predicated region
  $region2: #{tpu_custom_call.1} parent=0 // pred_check
    _
  $region3: #{tpu_custom_call.1} parent=0 // pred_check_branch
    %15 = sbr.rel (0) target = $region5
  $region4: #{tpu_custom_call.1} parent=0 // pred_region
    _
  $region5: #{tpu_custom_call.1} parent=0 // pred_fallthru
    _
  // Predicated region
  $region6: #{tpu_custom_call.1} parent=0 // pred_check
    _
  $region7: #{tpu_custom_call.1} parent=0 // pred_check_branch
    %17 = sbr.rel (0) target = $region9
  $region8: #{tpu_custom_call.1} parent=0 // pred_region
    _
  $region9: #{tpu_custom_call.1} parent=0 // pred_fallthru
    _
  // Predicated region
  $region10: #{tpu_custom_call.1} parent=0 // pred_check
    _
  $region11: #{tpu_custom_call.1} parent=0 // pred_check_branch
    %19 = sbr.rel (0) target = $region13
  $region12: #{tpu_custom_call.1} parent=0 // pred_region
    _
  $region13: #{tpu_custom_call.1} parent=0 // pred_fallthru
    _
  // Predicated region
  $region14: #{tpu_custom_call.1} parent=0 // pred_check
    _
  $region15: #{tpu_custom_call.1} parent=0 // pred_check_branch
    %21 = sbr.rel (0) target = $region17
  $region16: #{tpu_custom_call.1} parent=0 // pred_region
    _
  $region17: #{tpu_custom_call.1} parent=0 // pred_fallthru
    _
  // Predicated region
  $region18: #{tpu_custom_call.1} parent=0 // pred_check
    _
  $region19: #{tpu_custom_call.1} parent=0 // pred_check_branch
    %23 = sbr.rel (0) target = $region21
  $region20: #{tpu_custom_call.1} parent=0 // pred_region
    _
  $region21: #{tpu_custom_call.1} parent=0 // pred_fallthru
    _
  // Predicated region
  $region22: #{tpu_custom_call.1} parent=0 // pred_check
    _
  $region23: #{tpu_custom_call.1} parent=0 // pred_check_branch
    %25 = sbr.rel (0) target = $region25
  $region24: #{tpu_custom_call.1} parent=0 // pred_region
    _
  $region25: #{tpu_custom_call.1} parent=0 // pred_fallthru
    _
  // Predicated region
  $region26: #{tpu_custom_call.1} parent=0 // pred_check
    _
  $region27: #{tpu_custom_call.1} parent=0 // pred_check_branch
    %27 = sbr.rel (0) target = $region29
  $region28: #{tpu_custom_call.1} parent=0 // pred_region
    _
  $region29: #{tpu_custom_call.1} parent=0 // pred_fallthru
    _
  // Predicated region
  $region30: #{tpu_custom_call.1} parent=0 // pred_check
    _
  $region31: #{tpu_custom_call.1} parent=0 // pred_check_branch
    %29 = sbr.rel (0) target = $region33
  $region32: #{tpu_custom_call.1} parent=0 // pred_region
    _
  $region33: #{tpu_custom_call.1} parent=0 // pred_fallthru
    _
  // Predicated region
  $region34: #{tpu_custom_call.1} parent=0 // pred_check
    _
  $region35: #{tpu_custom_call.1} parent=0 // pred_check_branch
    %31 = sbr.rel (0) target = $region37
  $region36: #{tpu_custom_call.1} parent=0 // pred_region
    _
  $region37: #{tpu_custom_call.1} parent=0 // pred_fallthru
    _
  %v32 = vld [vmem:[%s0] sm:$0xff]
  %v33 = vld [vmem:[%s3] sm:$0xf]
  %v34 = vld [vmem:[%s4] sm:$0x1]
  %v36 = vlaneseq
  %v37 = vshrl.u32 %v36, 7
  %v38 = vsub.s32 0, %v37
  %v39 = vrot.slane %v34, %v38
  %vm41 = vcmask 31744
  %v43 = vsel %vm41, %v32, 0
  %vm45 = vcmask 1043456
  %v47 = vsel %vm45, %v33, 0
  %49 = vmatprep.subr.mxu0 0.0
  %50 = vmatpush1.msra.mxu0 %v47
  %51 = vmatprep.subr.mxu0 0.0
  %52 = vmatpush1.msra.mxu0 0.0
  %53 = vmatprep.subr.mxu0 0.0
  %54 = vmatpush1.msra.mxu0 0.0
  %55 = vmatprep.subr.mxu0 0.0
  %56 = vmatpush1.msra.mxu0 0.0
  %57 = vmatprep.subr.mxu0 0.0
  %58 = vmatpush1.msra.mxu0 0.0
  %59 = vmatprep.subr.mxu0 0.0
  %60 = vmatpush1.msra.mxu0 0.0
  %61 = vmatprep.subr.mxu0 0.0
  %62 = vmatpush1.msra.mxu0 0.0
  %63 = vmatprep.subr.mxu0 0.0
  %64 = vmatpush1.msra.mxu0 0.0
  %65 = vmatprep.subr.mxu0 0.0
  %66 = vmatpush1.msra.mxu0 0.0
  %67 = vmatprep.subr.mxu0 0.0
  %68 = vmatpush1.msra.mxu0 0.0
  %69 = vmatprep.subr.mxu0 0.0
  %70 = vmatpush1.msra.mxu0 0.0
  %71 = vmatprep.subr.mxu0 0.0
  %72 = vmatpush1.msra.mxu0 0.0
  %73 = vmatprep.subr.mxu0 0.0
  %74 = vmatpush1.msra.mxu0 0.0
  %75 = vmatprep.subr.mxu0 0.0
  %76 = vmatpush1.msra.mxu0 0.0
  %77 = vmatprep.subr.mxu0 0.0
  %78 = vmatpush1.msra.mxu0 0.0
  %79 = vmatprep.subr.mxu0 0.0
  %80 = vmatpush1.msra.mxu0 0.0
  %81 = vmatprep.subr.mxu0 0.0
  %82 = vmatpush1.msra.mxu0 0.0
  %83 = vmatprep.subr.mxu0 0.0
  %84 = vmatpush1.msra.mxu0 0.0
  %85 = vmatprep.subr.mxu0 0.0
  %86 = vmatpush1.msra.mxu0 0.0
  %87 = vmatprep.subr.mxu0 0.0
  %88 = vmatpush1.msra.mxu0 0.0
  %89 = vmatprep.subr.mxu0 0.0
  %90 = vmatpush1.msra.mxu0 0.0
  %91 = vmatprep.subr.mxu0 0.0
  %92 = vmatpush1.msra.mxu0 0.0
  %93 = vmatprep.subr.mxu0 0.0
  %94 = vmatpush1.msra.mxu0 0.0
  %95 = vmatprep.subr.mxu0 0.0
  %96 = vmatpush1.msra.mxu0 0.0
  %97 = vmatprep.subr.mxu0 0.0
  %98 = vmatpush1.msra.mxu0 0.0
  %99 = vmatprep.subr.mxu0 0.0
  %100 = vmatpush1.msra.mxu0 0.0
  %101 = vmatprep.subr.mxu0 0.0
  %102 = vmatpush1.msra.mxu0 0.0
  %103 = vmatprep.subr.mxu0 0.0
  %104 = vmatpush1.msra.mxu0 0.0
  %105 = vmatprep.subr.mxu0 0.0
  %106 = vmatpush1.msra.mxu0 0.0
  %107 = vmatprep.subr.mxu0 0.0
  %108 = vmatpush1.msra.mxu0 0.0
  %109 = vmatprep.subr.mxu0 0.0
  %110 = vmatpush1.msra.mxu0 0.0
  %111 = vmatprep.subr.mxu0 0.0
  %112 = vmatpush1.msra.mxu0 0.0
  %113 = vmatprep.mubr.f32.mxu0 0.0
  %114 = vmatmul.mubr.f32.gmra.mrb[0].mxu0 %v43
  %v115 = vpop.f32.mrb[0].mxu0
  %v116 = vadd.f32 %v39, %v115
  %v117 = vpop.f32.mrb[0].mxu0
  %118 = vdwg.mxu0
  %v119 = vmax.f32 %v116, 0.0
  %v120 = vld [vmem:[%s1] sm:$0xff]
  %vm121 = vcmp.lt.u32.totalorder %v120, 3435973836
  %v122 = vsel %vm121, %v119, 0.0
  %v123 = vld [vmem:[%s5] sm:$0xff]
  %v124 = vld [vmem:[%s5 + $0x8] sm:$0xff]
  %v125 = vld [vmem:[%s5 + $0x10] sm:$0xff]
  %v126 = vld [vmem:[%s5 + $0x18] sm:$0xff]
  %v127 = vld [vmem:[%s5 + $0x20] sm:$0xff]
  %v128 = vld [vmem:[%s5 + $0x28] sm:$0xff]
  %v129 = vld [vmem:[%s5 + $0x30] sm:$0x3]
  %v130 = vld [vmem:[%s6] sm:$0x1]
  %v132 = vlaneseq
  %v133 = vshrl.u32 %v132, 7
  %v134 = vsub.s32 0, %v133
  %v135 = vrot.slane %v130, %v134
  %vm137 = vcmask 408576
  %v139 = vsel %vm137, %v122, 0
  %vm141 = vcmask 1041408
  %v143 = vsel %vm141, %v129, 0
  %145 = vmatprep.subr.mxu0 0.0
  %146 = vmatpush1.msra.mxu0 %v123
  %147 = vmatprep.subr.mxu0 0.0
  %148 = vmatpush1.msra.mxu0 %v124
  %149 = vmatprep.subr.mxu0 0.0
  %150 = vmatpush1.msra.mxu0 %v125
  %151 = vmatprep.subr.mxu0 0.0
  %152 = vmatpush1.msra.mxu0 %v126
  %153 = vmatprep.subr.mxu0 0.0
  %154 = vmatpush1.msra.mxu0 %v127
  %155 = vmatprep.subr.mxu0 0.0
  %156 = vmatpush1.msra.mxu0 %v128
  %157 = vmatprep.subr.mxu0 0.0
  %158 = vmatpush1.msra.mxu0 %v143
  %159 = vmatprep.subr.mxu0 0.0
  %160 = vmatpush1.msra.mxu0 0.0
  %161 = vmatprep.subr.mxu0 0.0
  %162 = vmatpush1.msra.mxu0 0.0
  %163 = vmatprep.subr.mxu0 0.0
  %164 = vmatpush1.msra.mxu0 0.0
  %165 = vmatprep.subr.mxu0 0.0
  %166 = vmatpush1.msra.mxu0 0.0
  %167 = vmatprep.subr.mxu0 0.0
  %168 = vmatpush1.msra.mxu0 0.0
  %169 = vmatprep.subr.mxu0 0.0
  %170 = vmatpush1.msra.mxu0 0.0
  %171 = vmatprep.subr.mxu0 0.0
  %172 = vmatpush1.msra.mxu0 0.0
  %173 = vmatprep.subr.mxu0 0.0
  %174 = vmatpush1.msra.mxu0 0.0
  %175 = vmatprep.subr.mxu0 0.0
  %176 = vmatpush1.msra.mxu0 0.0
  %177 = vmatprep.subr.mxu0 0.0
  %178 = vmatpush1.msra.mxu0 0.0
  %179 = vmatprep.subr.mxu0 0.0
  %180 = vmatpush1.msra.mxu0 0.0
  %181 = vmatprep.subr.mxu0 0.0
  %182 = vmatpush1.msra.mxu0 0.0
  %183 = vmatprep.subr.mxu0 0.0
  %184 = vmatpush1.msra.mxu0 0.0
  %185 = vmatprep.subr.mxu0 0.0
  %186 = vmatpush1.msra.mxu0 0.0
  %187 = vmatprep.subr.mxu0 0.0
  %188 = vmatpush1.msra.mxu0 0.0
  %189 = vmatprep.subr.mxu0 0.0
  %190 = vmatpush1.msra.mxu0 0.0
  %191 = vmatprep.subr.mxu0 0.0
  %192 = vmatpush1.msra.mxu0 0.0
  %193 = vmatprep.subr.mxu0 0.0
  %194 = vmatpush1.msra.mxu0 0.0
  %195 = vmatprep.subr.mxu0 0.0
  %196 = vmatpush1.msra.mxu0 0.0
  %197 = vmatprep.subr.mxu0 0.0
  %198 = vmatpush1.msra.mxu0 0.0
  %199 = vmatprep.subr.mxu0 0.0
  %200 = vmatpush1.msra.mxu0 0.0
  %201 = vmatprep.subr.mxu0 0.0
  %202 = vmatpush1.msra.mxu0 0.0
  %203 = vmatprep.subr.mxu0 0.0
  %204 = vmatpush1.msra.mxu0 0.0
  %205 = vmatprep.subr.mxu0 0.0
  %206 = vmatpush1.msra.mxu0 0.0
  %207 = vmatprep.subr.mxu0 0.0
  %208 = vmatpush1.msra.mxu0 0.0
  %209 = vmatprep.mubr.f32.mxu0 0.0
  %210 = vmatmul.mubr.f32.gmra.mrb[0].mxu0 %v139
  %v211 = vpop.f32.mrb[0].mxu0
  %v212 = vadd.f32 %v135, %v211
  %v213 = vpop.f32.mrb[0].mxu0
  %214 = vdwg.mxu0
  %v215 = vmax.f32 %v212, 0.0
  %v216 = vld [vmem:[%s2] sm:$0xff]
  %vm217 = vcmp.lt.u32.totalorder %v216, 3435973836
  %v218 = vsel %vm217, %v215, 0.0
  %v219 = vld [vmem:[%s7] sm:$0xff]
  %v220 = vld [vmem:[%s7 + $0x8] sm:$0xff]
  %v221 = vld [vmem:[%s7 + $0x10] sm:$0xff]
  %v222 = vld [vmem:[%s7 + $0x18] sm:$0xff]
  %v223 = vld [vmem:[%s7 + $0x20] sm:$0xff]
  %v224 = vld [vmem:[%s7 + $0x28] sm:$0xff]
  %v225 = vld [vmem:[%s7 + $0x30] sm:$0x3]
  %v226 = vld [vmem:[%s8] sm:$0x1]
  %v228 = vlaneseq
  %v229 = vshrl.u32 %v228, 7
  %v230 = vsub.s32 0, %v229
  %v231 = vrot.slane %v226, %v230
  %v234 = vsel %vm137, %v218, 0
  %v237 = vsel %vm141, %v225, 0
  %239 = vmatprep.subr.mxu0 0.0
  %240 = vmatpush1.msra.mxu0 %v219
  %241 = vmatprep.subr.mxu0 0.0
  %242 = vmatpush1.msra.mxu0 %v220
  %243 = vmatprep.subr.mxu0 0.0
  %244 = vmatpush1.msra.mxu0 %v221
  %245 = vmatprep.subr.mxu0 0.0
  %246 = vmatpush1.msra.mxu0 %v222
  %247 = vmatprep.subr.mxu0 0.0
  %248 = vmatpush1.msra.mxu0 %v223
  %249 = vmatprep.subr.mxu0 0.0
  %250 = vmatpush1.msra.mxu0 %v224
  %251 = vmatprep.subr.mxu0 0.0
  %252 = vmatpush1.msra.mxu0 %v237
  %253 = vmatprep.subr.mxu0 0.0
  %254 = vmatpush1.msra.mxu0 0.0
  %255 = vmatprep.subr.mxu0 0.0
  %256 = vmatpush1.msra.mxu0 0.0
  %257 = vmatprep.subr.mxu0 0.0
  %258 = vmatpush1.msra.mxu0 0.0
  %259 = vmatprep.subr.mxu0 0.0
  %260 = vmatpush1.msra.mxu0 0.0
  %261 = vmatprep.subr.mxu0 0.0
  %262 = vmatpush1.msra.mxu0 0.0
  %263 = vmatprep.subr.mxu0 0.0
  %264 = vmatpush1.msra.mxu0 0.0
  %265 = vmatprep.subr.mxu0 0.0
  %266 = vmatpush1.msra.mxu0 0.0
  %267 = vmatprep.subr.mxu0 0.0
  %268 = vmatpush1.msra.mxu0 0.0
  %269 = vmatprep.subr.mxu0 0.0
  %270 = vmatpush1.msra.mxu0 0.0
  %271 = vmatprep.subr.mxu0 0.0
  %272 = vmatpush1.msra.mxu0 0.0
  %273 = vmatprep.subr.mxu0 0.0
  %274 = vmatpush1.msra.mxu0 0.0
  %275 = vmatprep.subr.mxu0 0.0
  %276 = vmatpush1.msra.mxu0 0.0
  %277 = vmatprep.subr.mxu0 0.0
  %278 = vmatpush1.msra.mxu0 0.0
  %279 = vmatprep.subr.mxu0 0.0
  %280 = vmatpush1.msra.mxu0 0.0
  %281 = vmatprep.subr.mxu0 0.0
  %282 = vmatpush1.msra.mxu0 0.0
  %283 = vmatprep.subr.mxu0 0.0
  %284 = vmatpush1.msra.mxu0 0.0
  %285 = vmatprep.subr.mxu0 0.0
  %286 = vmatpush1.msra.mxu0 0.0
  %287 = vmatprep.subr.mxu0 0.0
  %288 = vmatpush1.msra.mxu0 0.0
  %289 = vmatprep.subr.mxu0 0.0
  %290 = vmatpush1.msra.mxu0 0.0
  %291 = vmatprep.subr.mxu0 0.0
  %292 = vmatpush1.msra.mxu0 0.0
  %293 = vmatprep.subr.mxu0 0.0
  %294 = vmatpush1.msra.mxu0 0.0
  %295 = vmatprep.subr.mxu0 0.0
  %296 = vmatpush1.msra.mxu0 0.0
  %297 = vmatprep.subr.mxu0 0.0
  %298 = vmatpush1.msra.mxu0 0.0
  %299 = vmatprep.subr.mxu0 0.0
  %300 = vmatpush1.msra.mxu0 0.0
  %301 = vmatprep.subr.mxu0 0.0
  %302 = vmatpush1.msra.mxu0 0.0
  %303 = vmatprep.mubr.f32.mxu0 0.0
  %304 = vmatmul.mubr.f32.gmra.mrb[0].mxu0 %v234
  %v305 = vpop.f32.mrb[0].mxu0
  %v306 = vadd.f32 %v231, %v305
  %v307 = vpop.f32.mrb[0].mxu0
  %308 = vdwg.mxu0
  %vm309 = vcmask 23552
  %v310 = vsel %vm309, %v306, -inf
  %311 = vmax.xlane.f32.xlu0 %v310
  %v312 = vpop.xlane.xlu0 %311
  %v313 = vsub.f32 %v306, %v312
  %v314 = vmul.f32 %v313, 1.442695
  %v315 = vpow.pop %v314
  %v316 = vsel %vm309, %v315, 0.0
  %317 = vadd.xlane.f32.xlu0 %v316
  %v318 = vpop.xlane.xlu0 %317
  %v319 = vrcp.pop %v318
  %v320 = vmul.f32 %v315, %v319
  %321 = vst.msk [vmem:[%s9] sm:$0xff] %vm309, %v320
  // Predicated region
  $region38: #{tpu_custom_call.1} parent=0 // pred_check
    _
  $region39: #{tpu_custom_call.1} parent=0 // pred_check_branch
    %323 = sbr.rel (0) target = $region41
  $region40: #{tpu_custom_call.1} parent=0 // pred_region
    _
  $region41: #{tpu_custom_call.1} parent=0 // pred_fallthru
    _
  // Predicated region
  $region42: #{tpu_custom_call.1} parent=0 // pred_check
    _
  $region43: #{tpu_custom_call.1} parent=0 // pred_check_branch
    %325 = sbr.rel (0) target = $region45
  $region44: #{tpu_custom_call.1} parent=0 // pred_region
    _
  $region45: #{tpu_custom_call.1} parent=0 // pred_fallthru
    _

</llo_original>
